<compile_context>
chip_gen: v5e
topology: v5e:2x2
jax: 0.10.0
libtpu: 0.0.40
codegen_flags: <defaults>
</compile_context>

<pallas_src>
import functools

import jax
import jax.numpy as jnp
from jax.experimental import pallas as pl
from jax.experimental.pallas import tpu as pltpu

LN_EPS = 1e-5          # torch.nn.LayerNorm default
LANE = 128             # lane-dense feature padding
TILE_N = 512           # node tile for the dense aggregation (raised per review)
VMEM_LIMIT = 48 << 20  # <= ~48 MiB: safe on v7x (64 MiB phys) and v5e/v6e


def _round_up(v, m):
    return (v + m - 1) // m * m


def _pad2(a, rows, cols):
    return jnp.pad(a, ((0, rows - a.shape[0]), (0, cols - a.shape[1])))


# ----------------------------------------------------------------------------
# kernels
# ----------------------------------------------------------------------------
def encoder_kernel(x_ref, w_ref, b_ref, out_ref):
    # x0 = x @ Wne + bne  (node_encoder Linear); written bf16 so the streamed
    # conv1 feature operand is half the HBM bytes.
    out_ref[...] = (jnp.dot(x_ref[...], w_ref[...],
                            preferred_element_type=jnp.float32)
                    + b_ref[...]).astype(out_ref.dtype)


def _layer_norm_relu(x, gamma, beta, real_h):
    # Two-pass LayerNorm over the real (un-padded) hidden width. Padded lanes
    # are masked out of the stats and end up exactly zero because gamma/beta
    # are zero-padded (so downstream matmuls over padded K rows see zeros).
    lane = jax.lax.broadcasted_iota(jnp.int32, x.shape, dimension=x.ndim - 1)
    valid = lane < real_h
    inv_h = 1.0 / real_h
    mu = jnp.sum(x, axis=-1, keepdims=True) * inv_h
    d = jnp.where(valid, x - mu, 0.0)
    var = jnp.sum(d * d, axis=-1, keepdims=True) * inv_h
    y = d * jax.lax.rsqrt(var + LN_EPS) * gamma + beta
    return jnp.maximum(y, 0.0)  # ReLU


def conv1_kernel(nnz_ref, a_ref, feat_ref, invdeg_ref, wl_ref, wr_ref, bl_ref,
                 gamma_ref, beta_ref, x1_ref, h_ref, acc_ref, root_ref,
                 *, real_h):
    """First SAGEConv + LayerNorm + ReLU.  Outputs x1 (f32 residual), h (bf16)."""
    i = pl.program_id(0)
    k = pl.program_id(1)
    nk = pl.num_programs(1)

    @pl.when(k == 0)
    def _():
        acc_ref[...] = jnp.zeros_like(acc_ref)

    # un-normalized neighbor sum: edge-count A block (bf16, exact) @ features
    # (bf16); skipped entirely for all-zero adjacency blocks (block sparsity).
    @pl.when(nnz_ref[i * nk + k] > 0)
    def _():
        acc_ref[...] += jnp.dot(a_ref[...], feat_ref[...],
                                preferred_element_type=jnp.float32)

    # Root term hoisted off the epilogue: at k == i the streamed feature block
    # IS this row tile's own rows, so lin_r + bias runs while the k loop is
    # otherwise DMA-bound (and the separate hrow input stream is gone).
    @pl.when(k == i)
    def _():
        root = feat_ref[...].astype(jnp.float32)
        root_ref[...] = (jnp.dot(root, wr_ref[...],
                                 preferred_element_type=jnp.float32)
                         + bl_ref[...])

    @pl.when(k == nk - 1)
    def _():
        agg = acc_ref[...] * invdeg_ref[...]          # exact mean (f32 1/deg)
        x1 = jnp.dot(agg, wl_ref[...],
                     preferred_element_type=jnp.float32) + root_ref[...]
        x1_ref[...] = x1.astype(x1_ref.dtype)
        h_ref[...] = _layer_norm_relu(x1, gamma_ref[...], beta_ref[...],
                                      real_h).astype(h_ref.dtype)


def conv2_head_kernel(nnz_ref, a_ref, feat_ref, invdeg_ref, res_ref,
                      wl_ref, wr_ref, bl_ref, gamma_ref, beta_ref,
                      wlin_ref, blin_ref, out_ref, acc_ref, root_ref,
                      *, real_h):
    """Second SAGEConv + residual + LayerNorm + ReLU + output Linear."""
    i = pl.program_id(0)
    k = pl.program_id(1)
    nk = pl.num_programs(1)

    @pl.when(k == 0)
    def _():
        acc_ref[...] = jnp.zeros_like(acc_ref)

    @pl.when(nnz_ref[i * nk + k] > 0)
    def _():
        acc_ref[...] += jnp.dot(a_ref[...], feat_ref[...],
                                preferred_element_type=jnp.float32)

    @pl.when(k == i)
    def _():
        root = feat_ref[...].astype(jnp.float32)
        root_ref[...] = (jnp.dot(root, wr_ref[...],
                                 preferred_element_type=jnp.float32)
                         + bl_ref[...])

    @pl.when(k == nk - 1)
    def _():
        agg = acc_ref[...] * invdeg_ref[...]
        x2 = (jnp.dot(agg, wl_ref[...], preferred_element_type=jnp.float32)
              + root_ref[...] + res_ref[...])
        x3 = _layer_norm_relu(x2, gamma_ref[...], beta_ref[...], real_h)
        out_ref[...] = (jnp.dot(x3, wlin_ref[...],
                                preferred_element_type=jnp.float32)
                        + blin_ref[...]).astype(out_ref.dtype)


# ----------------------------------------------------------------------------
# wrapper / glue
# ----------------------------------------------------------------------------
def sage_forward(x, edge_index, params, *, tile_n=TILE_N):
    n, in_ch = x.shape
    h_ch = params["wne"].shape[1]
    out_ch = params["wlin"].shape[1]

    rows = _round_up(n, 8)
    tm = min(tile_n, rows)
    # v7x megacore occupancy: keep >= 2 lane-aligned row tiles whenever the
    # graph is big enough to split at zero padding cost.
    if tm == rows and rows >= 2 * LANE and rows % LANE == 0:
        tm = (rows // 2) // LANE * LANE
    n_pad = _round_up(n, tm)
    n_i = n_pad // tm

    # NOTE: in_ch is padded to LANE for a guaranteed-aligned encoder matmul;
    # the encoder is a one-shot minor kernel, so the extra K padding is noise
    # next to the O(N^2) aggregation streams (possible follow-up to trim).
    in_p = _round_up(in_ch, LANE)
    h_p = _round_up(h_ch, LANE)
    out_p = _round_up(out_ch, LANE)

    # lane-dense zero-padded operands (padding preserves semantics; LayerNorm
    # masks padded lanes, gamma/beta/weights are zero-padded)
    xp = _pad2(x.astype(jnp.float32), n_pad, in_p)

    # Adjacency as raw edge counts (small integers -> exact in bf16); the mean
    # scale 1/deg stays f32 and is applied once after the k loop.
    counts = jnp.zeros((n_pad, n_pad), jnp.float32).at[
        edge_index[1], edge_index[0]].add(1.0)
    inv_deg = 1.0 / jnp.maximum(jnp.sum(counts, axis=1, keepdims=True), 1.0)
    A = counts.astype(jnp.bfloat16)
    block_nnz = (counts.reshape(n_i, tm, n_i, tm).sum(axis=(1, 3)) > 0
                 ).astype(jnp.int32).reshape(-1)

    wne = _pad2(params["wne"], in_p, h_p)
    bne = _pad2(params["bne"], 1, h_p)
    wl = _pad2(params["wl"], h_p, h_p)
    wr = _pad2(params["wr"], h_p, h_p)
    bl = _pad2(params["bl"], 1, h_p)
    gamma = _pad2(params["gamma"], 1, h_p)
    beta = _pad2(params["beta"], 1, h_p)
    wlin = _pad2(params["wlin"], h_p, out_p)
    blin = _pad2(params["blin"], 1, out_p)

    cparams_1d = pltpu.CompilerParams(
        dimension_semantics=("parallel",), vmem_limit_bytes=VMEM_LIMIT)
    cparams_2d = pltpu.CompilerParams(
        dimension_semantics=("parallel", "arbitrary"),
        vmem_limit_bytes=VMEM_LIMIT)

    # 1) node encoder (writes bf16 features for the aggregation stream)
    x0 = pl.pallas_call(
        encoder_kernel,
        out_shape=jax.ShapeDtypeStruct((n_pad, h_p), jnp.bfloat16),
        grid=(n_i,),
        in_specs=[pl.BlockSpec((tm, in_p), lambda i: (i, 0)),
                  pl.BlockSpec((in_p, h_p), lambda i: (0, 0)),
                  pl.BlockSpec((1, h_p), lambda i: (0, 0))],
        out_specs=pl.BlockSpec((tm, h_p), lambda i: (i, 0)),
        compiler_params=cparams_1d,
    )(xp, wne, bne)

    # shared specs for the tiled aggregation kernels (index_maps receive the
    # scalar-prefetch ref as a trailing positional arg)
    a_spec = pl.BlockSpec((tm, tm), lambda i, k, nnz: (i, k))
    feat_spec = pl.BlockSpec((tm, h_p), lambda i, k, nnz: (k, 0))
    row_spec = pl.BlockSpec((tm, h_p), lambda i, k, nnz: (i, 0))
    invd_spec = pl.BlockSpec((tm, 1), lambda i, k, nnz: (i, 0))
    w_spec = pl.BlockSpec((h_p, h_p), lambda i, k, nnz: (0, 0))
    vec_spec = pl.BlockSpec((1, h_p), lambda i, k, nnz: (0, 0))

    # 2) first SAGEConv + LayerNorm + ReLU (x1 kept f32 for the residual,
    #    h written bf16 for the second aggregation stream)
    x1, h = pl.pallas_call(
        functools.partial(conv1_kernel, real_h=h_ch),
        out_shape=(jax.ShapeDtypeStruct((n_pad, h_p), jnp.float32),
                   jax.ShapeDtypeStruct((n_pad, h_p), jnp.bfloat16)),
        grid_spec=pltpu.PrefetchScalarGridSpec(
            num_scalar_prefetch=1,
            grid=(n_i, n_i),
            in_specs=[a_spec, feat_spec, invd_spec, w_spec, w_spec,
                      vec_spec, vec_spec, vec_spec],
            out_specs=(row_spec, row_spec),
            scratch_shapes=[pltpu.VMEM((tm, h_p), jnp.float32),   # acc
                            pltpu.VMEM((tm, h_p), jnp.float32)]), # root term
        compiler_params=cparams_2d,
    )(block_nnz, A, x0, inv_deg, wl, wr, bl, gamma, beta)

    # 3) second SAGEConv + residual + LayerNorm + ReLU + output Linear
    out_spec = pl.BlockSpec((tm, out_p), lambda i, k, nnz: (i, 0))
    wlin_spec = pl.BlockSpec((h_p, out_p), lambda i, k, nnz: (0, 0))
    blin_spec = pl.BlockSpec((1, out_p), lambda i, k, nnz: (0, 0))

    out = pl.pallas_call(
        functools.partial(conv2_head_kernel, real_h=h_ch),
        out_shape=jax.ShapeDtypeStruct((n_pad, out_p), jnp.float32),
        grid_spec=pltpu.PrefetchScalarGridSpec(
            num_scalar_prefetch=1,
            grid=(n_i, n_i),
            in_specs=[a_spec, feat_spec, invd_spec, row_spec, w_spec, w_spec,
                      vec_spec, vec_spec, vec_spec, wlin_spec, blin_spec],
            out_specs=out_spec,
            scratch_shapes=[pltpu.VMEM((tm, h_p), jnp.float32),   # acc
                            pltpu.VMEM((tm, h_p), jnp.float32)]), # root term
        compiler_params=cparams_2d,
    )(block_nnz, A, h, inv_deg, x1, wl, wr, bl, gamma, beta, wlin, blin)

    return out[:n, :out_ch]


# ----------------------------------------------------------------------------
# params + pure-JAX reference (for correctness check)
# ----------------------------------------------------------------------------
def init_params(key, in_channels, hidden_channels, out_channels):
    ks = jax.random.split(key, 6)

    def lin(k, fan_in, fan_out):
        bound = 1.0 / jnp.sqrt(fan_in)
        return jax.random.uniform(k, (fan_in, fan_out), jnp.float32, -bound, bound)

    return {
        "wne": lin(ks[0], in_channels, hidden_channels),
        "bne": jax.random.uniform(ks[1], (1, hidden_channels), jnp.float32, -0.1, 0.1),
        "wl": lin(ks[2], hidden_channels, hidden_channels),
        "bl": jax.random.uniform(ks[3], (1, hidden_channels), jnp.float32, -0.1, 0.1),
        "wr": lin(ks[4], hidden_channels, hidden_channels),
        "gamma": jnp.ones((1, hidden_channels), jnp.float32),
        "beta": jnp.zeros((1, hidden_channels), jnp.float32),
        "wlin": lin(ks[5], hidden_channels, out_channels),
        "blin": jnp.zeros((1, out_channels), jnp.float32),
    }


def reference_forward(x, edge_index, params):
    n = x.shape[0]
    src, dst = edge_index[0], edge_index[1]
    A = jnp.zeros((n, n), jnp.float32).at[dst, src].add(1.0)
    A = A / jnp.maximum(jnp.sum(A, axis=1, keepdims=True), 1.0)

    def conv(hh):
        return (A @ hh) @ params["wl"] + params["bl"] + hh @ params["wr"]

    def ln(hh):
        mu = jnp.mean(hh, axis=-1, keepdims=True)
        var = jnp.mean((hh - mu) ** 2, axis=-1, keepdims=True)
        return (hh - mu) * jax.lax.rsqrt(var + LN_EPS) * params["gamma"] + params["beta"]

    x0 = x @ params["wne"] + params["bne"]
    x1 = conv(x0)
    h = jnp.maximum(ln(x1), 0.0)
    x2 = conv(h) + x1
    x3 = jnp.maximum(ln(x2), 0.0)
    return x3 @ params["wlin"] + params["blin"]


if __name__ == "__main__":
    key = jax.random.PRNGKey(0)
    k_x, k_e, k_p = jax.random.split(key, 3)

    N_NODES, IN_CH, HIDDEN, OUT_CH, N_EDGES = 16, 8, 32, 8, 48

    x = jax.random.normal(k_x, (N_NODES, IN_CH), jnp.float32)
    edge_index = jax.random.randint(k_e, (2, N_EDGES), 0, N_NODES, jnp.int32)
    params = init_params(k_p, IN_CH, HIDDEN, OUT_CH)

    out = sage_forward(x, edge_index, params)
    jax.block_until_ready(out)
    assert out.shape == (N_NODES, OUT_CH)

    ref = reference_forward(x, edge_index, params)
    err = float(jnp.max(jnp.abs(out - ref)))
    assert err < 5e-2, f"max abs error vs reference: {err}"
    print("KERNEL_OK")
</pallas_src>

<mosaic_0001>
module attributes {stable_mosaic.version = 11 : i64} {
  func.func @encoder_kernel(%arg0: i32, %arg1: memref<16x128xf32, #tpu.memory_space<vmem>>, %arg2: memref<128x128xf32, #tpu.memory_space<vmem>>, %arg3: memref<1x128xf32, #tpu.memory_space<vmem>>, %arg4: memref<16x128xbf16, #tpu.memory_space<vmem>>) attributes {dimension_semantics = [#tpu.dimension_semantics<parallel>], iteration_bounds = array<i64: 1>, scalar_prefetch = 0 : i64, scratch_operands = 0 : i64, tpu.core_type = #tpu.core_type<tc>, window_params = [{transform_indices = @transform_0, window_bounds = array<i64: 16, 128>}, {pipeline_mode = #tpu.pipeline_mode<synchronous>, transform_indices = @transform_1, window_bounds = array<i64: 128, 128>}, {pipeline_mode = #tpu.pipeline_mode<synchronous>, transform_indices = @transform_2, window_bounds = array<i64: 1, 128>}, {transform_indices = @transform_3, window_bounds = array<i64: 16, 128>}]} {
    %c0 = arith.constant 0 : index
    %c0_0 = arith.constant 0 : index
    %0 = vector.load %arg1[%c0, %c0_0] : memref<16x128xf32, #tpu.memory_space<vmem>>, vector<16x128xf32>
    %c0_1 = arith.constant 0 : index
    %c0_2 = arith.constant 0 : index
    %1 = vector.load %arg2[%c0_1, %c0_2] : memref<128x128xf32, #tpu.memory_space<vmem>>, vector<128x128xf32>
    %cst = arith.constant dense<0.000000e+00> : vector<16x128xf32>
    %2 = tpu.matmul %0, %1, %cst {dimension_numbers = #tpu.dot_dimension_numbers<[1], [0], [0], [1], [0, 0, 1, 1], [], []>} : vector<16x128xf32>, vector<128x128xf32>, vector<16x128xf32> -> vector<16x128xf32>
    %c0_3 = arith.constant 0 : index
    %c0_4 = arith.constant 0 : index
    %3 = vector.load %arg3[%c0_3, %c0_4] : memref<1x128xf32, #tpu.memory_space<vmem>>, vector<1x128xf32>
    %4 = vector.broadcast %3 : vector<1x128xf32> to vector<16x128xf32>
    %5 = arith.addf %2, %4 : vector<16x128xf32>
    %6 = arith.truncf %5 : vector<16x128xf32> to vector<16x128xbf16>
    %c0_5 = arith.constant 0 : index
    %c0_6 = arith.constant 0 : index
    %7 = vector.load %arg4[%c0_5, %c0_6] : memref<16x128xbf16, #tpu.memory_space<vmem>>, vector<16x128xbf16>
    tpu.vector_store %arg4[%c0_5, %c0_6], %6 {strides = array<i32>} : memref<16x128xbf16, #tpu.memory_space<vmem>>, vector<16x128xbf16>,
    return
  }
  func.func @transform_0(%arg0: i32) -> (i32, i32) {
    %c0_i32 = arith.constant 0 : i32
    %c0_i32_0 = arith.constant 0 : i32
    return %arg0, %c0_i32 : i32, i32
  }
  func.func @transform_1(%arg0: i32) -> (i32, i32) {
    %c0_i32 = arith.constant 0 : i32
    %c0_i32_0 = arith.constant 0 : i32
    %c0_i32_1 = arith.constant 0 : i32
    return %c0_i32, %c0_i32_0 : i32, i32
  }
  func.func @transform_2(%arg0: i32) -> (i32, i32) {
    %c0_i32 = arith.constant 0 : i32
    %c0_i32_0 = arith.constant 0 : i32
    %c0_i32_1 = arith.constant 0 : i32
    return %c0_i32, %c0_i32_0 : i32, i32
  }
  func.func @transform_3(%arg0: i32) -> (i32, i32) {
    %c0_i32 = arith.constant 0 : i32
    %c0_i32_0 = arith.constant 0 : i32
    return %arg0, %c0_i32 : i32, i32
  }
}

</mosaic_0001>

<llo_original>
// kernel: tpu_custom_call.1
$region0: #{tpu_custom_call.1}
  #allocation0 [shape = 'u32[]', space=smem, size = 0x4, offset = 0x4, fixed_abs, tag = 'smem constant byte address 0x4 - core index']
  #allocation1 [shape = 'u32[72,128]{1,0:T(1,128)}', space=vmem, size = 0x9000, scoped, tag = 'internal scratch']
  %s0 = inlined_call_operand.hbm [shape: f32[16,128], index: 0, kind: input, shape index: {}]
  %s1 = inlined_call_operand.hbm [shape: f32[128,128], index: 1, kind: input, shape index: {}]
  %s2 = inlined_call_operand.vmem [shape: f32[1,128], index: 2, kind: input, shape index: {}]
  %s3 = inlined_call_operand.hbm [shape: bf16[16,128], index: 3, kind: output, shape index: {}]
  %s4 = sld [smem:[#allocation0]]
  $region30: #{tpu_custom_call.1} parent=0
    _
  %s6 = ssub.s32 1, %s4
  %s7 = scalar_select 0, %s6, %s4
  $region1: #{tpu_custom_call.1} parent=0
    #allocation2 [shape = 'u8[8192]{0}', space=vmem, size = 0x2000, scoped, tag = 'input window, operand 0, single buffered']
    #allocation3 [shape = 's32[1]{0}', space=sflag, size = 0x4, scoped, tag = 'scoped memory for tpu_custom_call.1']
    #allocation4 [shape = 's32[1]{0}', space=sflag, size = 0x4, scoped, tag = 'scoped memory for tpu_custom_call.1']
    #allocation5 [shape = 'u8[65536]{0}', space=vmem, size = 0x10000, scoped, tag = 'input window, operand 1, single buffered']
    #allocation6 [shape = 's32[1]{0}', space=sflag, size = 0x4, scoped, tag = 'scoped memory for tpu_custom_call.1']
    #allocation7 [shape = 'u8[4096]{0}', space=vmem, size = 0x1000, scoped, tag = 'output window, operand 0, single buffered']
    %8 = vsyncpa [#allocation3], 0
    %9 = vsyncpa [#allocation6], 0
    %10 = vsyncpa [#allocation4], 0
    // Predicated region
    $region2: #{tpu_custom_call.1} parent=1 // pred_check
      _
    $region3: #{tpu_custom_call.1} parent=1 // pred_check_branch
      %12 = sbr.rel (0) target = $region5
    $region4: #{tpu_custom_call.1} parent=1 // pred_region
      %14 = vsyncadd [#allocation3], 0
      %s15 = sshll.u32 %s0, 4
      %s16 = int_to_ptr.hbm [resolvable:$true] %s15
      %s17 = sshll.u32 [#allocation2], 4
      %s18 = int_to_ptr.vmem [resolvable:$true] %s17
      %23 = dma.hbm_to_vmem [thread:$0]  %s16, 256, %s18, [#allocation3], 128, 128, 8
    $region5: #{tpu_custom_call.1} parent=1 // pred_fallthru
      _
    // Predicated region
    $region6: #{tpu_custom_call.1} parent=1 // pred_check
      _
    $region7: #{tpu_custom_call.1} parent=1 // pred_check_branch
      %25 = sbr.rel (0) target = $region9
    $region8: #{tpu_custom_call.1} parent=1 // pred_region
      %27 = vsyncadd [#allocation6], 0
      %s28 = sshll.u32 %s1, 4
      %s29 = int_to_ptr.hbm [resolvable:$true] %s28
      %s30 = sshll.u32 [#allocation5], 4
      %s31 = int_to_ptr.vmem [resolvable:$true] %s30
      %36 = dma.hbm_to_vmem [thread:$0]  %s29, 2048, %s31, [#allocation6], 128, 128, 8
    $region9: #{tpu_custom_call.1} parent=1 // pred_fallthru
      _
    // Predicated region
    $region10: #{tpu_custom_call.1} parent=1 // pred_check
      _
    $region11: #{tpu_custom_call.1} parent=1 // pred_check_branch
      %38 = sbr.rel (0) target = $region13
    $region12: #{tpu_custom_call.1} parent=1 // pred_region
      _
    $region13: #{tpu_custom_call.1} parent=1 // pred_fallthru
      _
    // Predicated region
    $region14: #{tpu_custom_call.1} parent=1 // pred_check
      _
    $region15: #{tpu_custom_call.1} parent=1 // pred_check_branch
      %40 = sbr.rel (0) target = $region17
    $region16: #{tpu_custom_call.1} parent=1 // pred_region
      %42 = dma.done [#allocation3], 256
    $region17: #{tpu_custom_call.1} parent=1 // pred_fallthru
      _
    // Predicated region
    $region18: #{tpu_custom_call.1} parent=1 // pred_check
      _
    $region19: #{tpu_custom_call.1} parent=1 // pred_check_branch
      %44 = sbr.rel (0) target = $region21
    $region20: #{tpu_custom_call.1} parent=1 // pred_region
      %46 = dma.done [#allocation6], 2048
    $region21: #{tpu_custom_call.1} parent=1 // pred_fallthru
      _
    %v47 = vld [vmem:[#allocation2] sm:$0xff]
    %v48 = vld [vmem:[#allocation2 + $0x8] sm:$0xff]
    %v49 = vld [vmem:[#allocation5] sm:$0xff]
    %v50 = vld [vmem:[#allocation5 + $0x8] sm:$0xff]
    %v51 = vld [vmem:[#allocation5 + $0x10] sm:$0xff]
    %v52 = vld [vmem:[#allocation5 + $0x18] sm:$0xff]
    %v53 = vld [vmem:[#allocation5 + $0x20] sm:$0xff]
    %v54 = vld [vmem:[#allocation5 + $0x28] sm:$0xff]
    %v55 = vld [vmem:[#allocation5 + $0x30] sm:$0xff]
    %v56 = vld [vmem:[#allocation5 + $0x38] sm:$0xff]
    %v57 = vld [vmem:[#allocation5 + $0x40] sm:$0xff]
    %v58 = vld [vmem:[#allocation5 + $0x48] sm:$0xff]
    %v59 = vld [vmem:[#allocation5 + $0x50] sm:$0xff]
    %v60 = vld [vmem:[#allocation5 + $0x58] sm:$0xff]
    %v61 = vld [vmem:[#allocation5 + $0x60] sm:$0xff]
    %v62 = vld [vmem:[#allocation5 + $0x68] sm:$0xff]
    %v63 = vld [vmem:[#allocation5 + $0x70] sm:$0xff]
    %v64 = vld [vmem:[#allocation5 + $0x78] sm:$0xff]
    %v65 = vld [vmem:[%s2] sm:$0x1]
    %v67 = vperm.slane %v65, 0
    %69 = vmatpush.msra.mxu0 %v64
    %70 = vmatpush.msra.mxu0 %v63
    %71 = vmatpush.msra.mxu0 %v62
    %72 = vmatpush.msra.mxu0 %v61
    %73 = vmatpush.msra.mxu0 %v60
    %74 = vmatpush.msra.mxu0 %v59
    %75 = vmatpush.msra.mxu0 %v58
    %76 = vmatpush.msra.mxu0 %v57
    %77 = vmatpush.msra.mxu0 %v56
    %78 = vmatpush.msra.mxu0 %v55
    %79 = vmatpush.msra.mxu0 %v54
    %80 = vmatpush.msra.mxu0 %v53
    %81 = vmatpush.msra.mxu0 %v52
    %82 = vmatpush.msra.mxu0 %v51
    %83 = vmatpush.msra.mxu0 %v50
    %84 = vmatpush.msra.mxu0 %v49
    %85 = vmatmul.f32.gmra.mxu0 %v47
    %v86 = vpop.f32.mrf.mxu0
    %v87 = vadd.f32 %v67, %v86
    %88 = vmatmul.f32.gmra.mxu0 %v48
    %v89 = vpop.f32.mrf.mxu0
    %v90 = vadd.f32 %v67, %v89
    %91 = vdwg.mxu0
    %v92 = vpack.c.bf16 %v87, %v87
    %v93 = vpack.c.bf16 %v90, %v90
    %94 = vst [vmem:[#allocation7] sm:$0xf] %v92
    %95 = vst [vmem:[#allocation7 + $0x4] sm:$0xf] %v93
    // Predicated region
    $region22: #{tpu_custom_call.1} parent=1 // pred_check
      _
    $region23: #{tpu_custom_call.1} parent=1 // pred_check_branch
      %97 = sbr.rel (0) target = $region25
    $region24: #{tpu_custom_call.1} parent=1 // pred_region
      %99 = vsyncadd [#allocation4], 0
      %s100 = sshll.u32 [#allocation7], 4
      %s101 = int_to_ptr.vmem [resolvable:$true] %s100
      %s102 = sshll.u32 %s3, 4
      %s103 = int_to_ptr.hbm [resolvable:$true] %s102
      %108 = dma.vmem_to_hbm [thread:$0]  %s101, 128, %s103, [#allocation4], 64, 64, 4
    $region25: #{tpu_custom_call.1} parent=1 // pred_fallthru
      _
    // Predicated region
    $region26: #{tpu_custom_call.1} parent=1 // pred_check
      _
    $region27: #{tpu_custom_call.1} parent=1 // pred_check_branch
      %110 = sbr.rel (0) target = $region29
    $region28: #{tpu_custom_call.1} parent=1 // pred_region
      %112 = dma.done [#allocation4], 128
    $region29: #{tpu_custom_call.1} parent=1 // pred_fallthru
      _
    %113 = vsyncpa [#allocation3], 1
    %114 = vsyncpa [#allocation6], 1
    %115 = vsyncpa [#allocation4], 1

</llo_original>
